<compile_context>
chip_gen: v5e
topology: v5e:2x2
jax: 0.10.0
libtpu: 0.0.40
codegen_flags: <defaults>
</compile_context>

<pallas_src>
import math

import jax
import jax.numpy as jnp
from jax.experimental import pallas as pl
from jax.experimental.pallas import tpu as pltpu


def _make_kernel(L, E, H, compute_dtype):
    scale = 1.0 / math.sqrt(float(L))  # matches torch: 1/sqrt(q.size(2)) == 1/sqrt(L)
    eps = 1e-5
    cdt = compute_dtype

    def kernel(x_ref, mod_ref,
               ln1w, ln1b, ln2w, ln2b,
               wqkv_w, wqkv_b, lv_w, lv_b, f1_w, f1_b, f2_w, f2_b,
               out_ref, o_scratch):
        x = x_ref[0]          # (L, E) f32
        mod = mod_ref[0]      # (6, E) f32: [gamma1, beta1, alpha1, gamma2, beta2, alpha2]
        gamma1, beta1, alpha1 = mod[0:1], mod[1:2], mod[2:3]
        gamma2, beta2, alpha2 = mod[3:4], mod[4:5], mod[5:6]

        def mm(a, w_ref, b_ref):
            # MXU matmul in compute dtype (f32 or bf16), f32 accumulation.
            out = jnp.dot(a.astype(cdt), w_ref[...].astype(cdt),
                          preferred_element_type=jnp.float32)
            return out + b_ref[...]

        def layernorm(v, w_ref, b_ref):
            mu = jnp.mean(v, axis=-1, keepdims=True)
            var = jnp.mean((v - mu) ** 2, axis=-1, keepdims=True)
            return (v - mu) * jax.lax.rsqrt(var + eps) * w_ref[...] + b_ref[...]

        # --- attention branch ---
        y = layernorm(x, ln1w, ln1b)            # (L, E) f32
        y = y * (1.0 + gamma1) + beta1          # adaLN modulation (broadcast (1,E))

        qkv = mm(y, wqkv_w, wqkv_b)             # fused QKV: (L, 3*H*E) f32

        for h in range(H):
            qh = qkv[:, h * E:(h + 1) * E] * scale              # scale folded into Q
            kh = qkv[:, (H + h) * E:(H + h + 1) * E]
            vh = qkv[:, (2 * H + h) * E:(2 * H + h + 1) * E]
            # contract last axis of both operands: no explicit K transpose
            s = jax.lax.dot_general(
                qh.astype(cdt), kh.astype(cdt),
                dimension_numbers=(((1,), (1,)), ((), ())),
                preferred_element_type=jnp.float32)             # (L, L)
            s = s - jnp.max(s, axis=-1, keepdims=True)
            p = jnp.exp(s)
            p = p * pl.reciprocal(jnp.sum(p, axis=-1, keepdims=True), approx=True)
            # write head output directly into its lane slice (no concat)
            o_scratch[:, h * E:(h + 1) * E] = jnp.dot(
                p.astype(cdt), vh.astype(cdt), preferred_element_type=jnp.float32)

        attn_out = mm(o_scratch[...], lv_w, lv_b) * alpha1      # (L, E)
        y_res = x + attn_out                                    # residual 1

        # --- MLP branch ---
        z = layernorm(y_res, ln2w, ln2b)
        z = z * (1.0 + gamma2) + beta2
        z = jnp.maximum(mm(z, f1_w, f1_b), 0.0)                 # ReLU
        z = mm(z, f2_w, f2_b) * alpha2

        out_ref[0] = y_res + z

    return kernel


def dit_block_pallas(x, cond, params, compute_dtype=jnp.float32):
    """x: (B, L, E) f32, cond: (B, E) f32, params: dict of weights (pre-transposed)."""
    B, L, E = x.shape
    H = params["nhead"]

    # Hoisted adaLN conditioning: one (B,E)@(E,6E) matmul in plain JAX/XLA.
    w_mod = jnp.concatenate([params["g1_w"], params["b1_w"], params["a1_w"],
                             params["g2_w"], params["b2_w"], params["a2_w"]], axis=1)
    b_mod = jnp.concatenate([params["g1_b"], params["b1_b"], params["a1_b"],
                             params["g2_b"], params["b2_b"], params["a2_b"]], axis=1)
    mod = (cond @ w_mod + b_mod).reshape(B, 6, E).astype(jnp.float32)

    # Fused QKV projection weights.
    wqkv_w = jnp.concatenate([params["wq_w"], params["wk_w"], params["wv_w"]], axis=1)
    wqkv_b = jnp.concatenate([params["wq_b"], params["wk_b"], params["wv_b"]], axis=1)

    wdt = compute_dtype  # weights cast host-side (halves VMEM residency when bf16)
    plist = [
        params["ln1_w"], params["ln1_b"], params["ln2_w"], params["ln2_b"],
        wqkv_w.astype(wdt), wqkv_b,
        params["lv_w"].astype(wdt), params["lv_b"],
        params["f1_w"].astype(wdt), params["f1_b"],
        params["f2_w"].astype(wdt), params["f2_b"],
    ]

    def full_spec(arr):
        nd = arr.ndim
        return pl.BlockSpec(arr.shape, lambda b, _n=nd: (0,) * _n)

    in_specs = [
        pl.BlockSpec((1, L, E), lambda b: (b, 0, 0)),   # x
        pl.BlockSpec((1, 6, E), lambda b: (b, 0, 0)),   # modulation vectors
    ] + [full_spec(p) for p in plist]

    kernel = _make_kernel(L, E, H, compute_dtype)

    return pl.pallas_call(
        kernel,
        out_shape=jax.ShapeDtypeStruct((B, L, E), jnp.float32),
        grid=(B,),
        in_specs=in_specs,
        out_specs=pl.BlockSpec((1, L, E), lambda b: (b, 0, 0)),
        scratch_shapes=[pltpu.VMEM((L, H * E), jnp.float32)],
        compiler_params=pltpu.CompilerParams(
            dimension_semantics=("parallel",),      # lets v7x use both TCs
            vmem_limit_bytes=32 * 1024 * 1024,
        ),
    )(x, mod, *plist)


def init_params(key, emb_size, nhead):
    """Deterministic synthetic parameter init (matches PyTorch module shapes)."""
    ks = jax.random.split(key, 32)
    i = 0

    def nxt():
        nonlocal i
        k = ks[i]
        i += 1
        return k

    def linear(din, dout):
        # weight stored pre-transposed as (din, dout); bias as (1, dout)
        w = jax.random.normal(nxt(), (din, dout), jnp.float32) * 0.05
        b = jax.random.normal(nxt(), (1, dout), jnp.float32) * 0.05
        return w, b

    E, H = emb_size, nhead
    p = {"nhead": H}
    p["g1_w"], p["g1_b"] = linear(E, E)
    p["b1_w"], p["b1_b"] = linear(E, E)
    p["a1_w"], p["a1_b"] = linear(E, E)
    p["g2_w"], p["g2_b"] = linear(E, E)
    p["b2_w"], p["b2_b"] = linear(E, E)
    p["a2_w"], p["a2_b"] = linear(E, E)
    p["ln1_w"] = jnp.ones((1, E), jnp.float32)
    p["ln1_b"] = jnp.zeros((1, E), jnp.float32)
    p["ln2_w"] = jnp.ones((1, E), jnp.float32)
    p["ln2_b"] = jnp.zeros((1, E), jnp.float32)
    p["wq_w"], p["wq_b"] = linear(E, H * E)
    p["wk_w"], p["wk_b"] = linear(E, H * E)
    p["wv_w"], p["wv_b"] = linear(E, H * E)
    p["lv_w"], p["lv_b"] = linear(H * E, E)
    p["f1_w"], p["f1_b"] = linear(E, 4 * E)
    p["f2_w"], p["f2_b"] = linear(4 * E, E)
    return p


def dit_block_ref(x, cond, p):
    """Pure-JAX reference replicating the PyTorch forward exactly (f32)."""
    B, L, E = x.shape
    H = p["nhead"]

    def lin(v, w, b):
        return v @ w + b

    def ln(v, w, b):
        mu = jnp.mean(v, axis=-1, keepdims=True)
        var = jnp.mean((v - mu) ** 2, axis=-1, keepdims=True)
        return (v - mu) / jnp.sqrt(var + 1e-5) * w + b

    gamma1 = lin(cond, p["g1_w"], p["g1_b"])
    beta1 = lin(cond, p["b1_w"], p["b1_b"])
    alpha1 = lin(cond, p["a1_w"], p["a1_b"])
    gamma2 = lin(cond, p["g2_w"], p["g2_b"])
    beta2 = lin(cond, p["b2_w"], p["b2_b"])
    alpha2 = lin(cond, p["a2_w"], p["a2_b"])

    y = ln(x, p["ln1_w"][0], p["ln1_b"][0])
    y = y * (1 + gamma1[:, None, :]) + beta1[:, None, :]
    q = lin(y, p["wq_w"], p["wq_b"]).reshape(B, L, H, E).transpose(0, 2, 1, 3)
    k = lin(y, p["wk_w"], p["wk_b"]).reshape(B, L, H, E).transpose(0, 2, 3, 1)
    v = lin(y, p["wv_w"], p["wv_b"]).reshape(B, L, H, E).transpose(0, 2, 1, 3)
    attn = (q @ k) / math.sqrt(L)
    attn = jax.nn.softmax(attn, axis=-1)
    y = (attn @ v).transpose(0, 2, 1, 3).reshape(B, L, H * E)
    y = lin(y, p["lv_w"], p["lv_b"]) * alpha1[:, None, :]
    y = x + y
    z = ln(y, p["ln2_w"][0], p["ln2_b"][0])
    z = z * (1 + gamma2[:, None, :]) + beta2[:, None, :]
    z = jax.nn.relu(lin(z, p["f1_w"], p["f1_b"]))
    z = lin(z, p["f2_w"], p["f2_b"]) * alpha2[:, None, :]
    return y + z


if __name__ == "__main__":
    B, L, E, H = 2, 8, 32, 2
    key = jax.random.PRNGKey(0)
    kx, kc, kp = jax.random.split(key, 3)
    x = jax.random.normal(kx, (B, L, E), jnp.float32)
    cond = jax.random.normal(kc, (B, E), jnp.float32)
    params = init_params(kp, E, H)

    ref = dit_block_ref(x, cond, params)

    # f32 compute path
    out = jax.block_until_ready(dit_block_pallas(x, cond, params))
    assert out.shape == (B, L, E)
    err = float(jnp.max(jnp.abs(out - ref)))
    assert jnp.allclose(out, ref, atol=1e-2, rtol=1e-2), err

    # bf16 MXU path (v6e/v7x optimization) — loosened tolerance vs f32 reference
    out_bf16 = jax.block_until_ready(
        dit_block_pallas(x, cond, params, compute_dtype=jnp.bfloat16))
    err_bf16 = float(jnp.max(jnp.abs(out_bf16 - ref)))
    assert jnp.allclose(out_bf16, ref, atol=1e-1, rtol=1e-1), err_bf16

    print("KERNEL_OK")
</pallas_src>

<mosaic_0001>
module attributes {stable_mosaic.version = 11 : i64} {
  func.func @kernel(%arg0: i32, %arg1: memref<1x8x32xf32, #tpu.memory_space<vmem>>, %arg2: memref<1x6x32xf32, #tpu.memory_space<vmem>>, %arg3: memref<1x32xf32, #tpu.memory_space<vmem>>, %arg4: memref<1x32xf32, #tpu.memory_space<vmem>>, %arg5: memref<1x32xf32, #tpu.memory_space<vmem>>, %arg6: memref<1x32xf32, #tpu.memory_space<vmem>>, %arg7: memref<32x192xf32, #tpu.memory_space<vmem>>, %arg8: memref<1x192xf32, #tpu.memory_space<vmem>>, %arg9: memref<64x32xf32, #tpu.memory_space<vmem>>, %arg10: memref<1x32xf32, #tpu.memory_space<vmem>>, %arg11: memref<32x128xf32, #tpu.memory_space<vmem>>, %arg12: memref<1x128xf32, #tpu.memory_space<vmem>>, %arg13: memref<128x32xf32, #tpu.memory_space<vmem>>, %arg14: memref<1x32xf32, #tpu.memory_space<vmem>>, %arg15: memref<1x8x32xf32, #tpu.memory_space<vmem>>, %arg16: memref<8x64xf32, #tpu.memory_space<vmem>>) attributes {dimension_semantics = [#tpu.dimension_semantics<parallel>], iteration_bounds = array<i64: 2>, scalar_prefetch = 0 : i64, scratch_operands = 1 : i64, tpu.core_type = #tpu.core_type<tc>, window_params = [{transform_indices = @transform_0, window_bounds = array<i64: 1, 8, 32>}, {transform_indices = @transform_1, window_bounds = array<i64: 1, 6, 32>}, {pipeline_mode = #tpu.pipeline_mode<synchronous>, transform_indices = @transform_2, window_bounds = array<i64: 1, 32>}, {pipeline_mode = #tpu.pipeline_mode<synchronous>, transform_indices = @transform_3, window_bounds = array<i64: 1, 32>}, {pipeline_mode = #tpu.pipeline_mode<synchronous>, transform_indices = @transform_4, window_bounds = array<i64: 1, 32>}, {pipeline_mode = #tpu.pipeline_mode<synchronous>, transform_indices = @transform_5, window_bounds = array<i64: 1, 32>}, {pipeline_mode = #tpu.pipeline_mode<synchronous>, transform_indices = @transform_6, window_bounds = array<i64: 32, 192>}, {pipeline_mode = #tpu.pipeline_mode<synchronous>, transform_indices = @transform_7, window_bounds = array<i64: 1, 192>}, {pipeline_mode = #tpu.pipeline_mode<synchronous>, transform_indices = @transform_8, window_bounds = array<i64: 64, 32>}, {pipeline_mode = #tpu.pipeline_mode<synchronous>, transform_indices = @transform_9, window_bounds = array<i64: 1, 32>}, {pipeline_mode = #tpu.pipeline_mode<synchronous>, transform_indices = @transform_10, window_bounds = array<i64: 32, 128>}, {pipeline_mode = #tpu.pipeline_mode<synchronous>, transform_indices = @transform_11, window_bounds = array<i64: 1, 128>}, {pipeline_mode = #tpu.pipeline_mode<synchronous>, transform_indices = @transform_12, window_bounds = array<i64: 128, 32>}, {pipeline_mode = #tpu.pipeline_mode<synchronous>, transform_indices = @transform_13, window_bounds = array<i64: 1, 32>}, {transform_indices = @transform_14, window_bounds = array<i64: 1, 8, 32>}]} {
    %c0 = arith.constant 0 : index
    %c0_0 = arith.constant 0 : index
    %c0_1 = arith.constant 0 : index
    %0 = vector.load %arg1[%c0, %c0_0, %c0_1] : memref<1x8x32xf32, #tpu.memory_space<vmem>>, vector<1x8x32xf32>
    %1 = vector.shape_cast %0 : vector<1x8x32xf32> to vector<8x32xf32>
    %c0_2 = arith.constant 0 : index
    %c0_3 = arith.constant 0 : index
    %c0_4 = arith.constant 0 : index
    %2 = vector.load %arg2[%c0_2, %c0_3, %c0_4] : memref<1x6x32xf32, #tpu.memory_space<vmem>>, vector<1x6x32xf32>
    %3 = vector.shape_cast %2 : vector<1x6x32xf32> to vector<6x32xf32>
    %4 = vector.extract_strided_slice %3 {offsets = [0, 0], sizes = [1, 32], strides = [1, 1]} : vector<6x32xf32> to vector<1x32xf32>
    %5 = vector.extract_strided_slice %3 {offsets = [1, 0], sizes = [1, 32], strides = [1, 1]} : vector<6x32xf32> to vector<1x32xf32>
    %6 = vector.extract_strided_slice %3 {offsets = [2, 0], sizes = [1, 32], strides = [1, 1]} : vector<6x32xf32> to vector<1x32xf32>
    %7 = vector.extract_strided_slice %3 {offsets = [3, 0], sizes = [1, 32], strides = [1, 1]} : vector<6x32xf32> to vector<1x32xf32>
    %8 = vector.extract_strided_slice %3 {offsets = [4, 0], sizes = [1, 32], strides = [1, 1]} : vector<6x32xf32> to vector<1x32xf32>
    %9 = vector.extract_strided_slice %3 {offsets = [5, 0], sizes = [1, 32], strides = [1, 1]} : vector<6x32xf32> to vector<1x32xf32>
    %cst = arith.constant dense<0.000000e+00> : vector<8xf32>
    %10 = vector.multi_reduction <add>, %1, %cst [1] : vector<8x32xf32> to vector<8xf32>
    %11 = vector.shape_cast %10 : vector<8xf32> to vector<8x1xf32>
    %cst_5 = arith.constant 3.200000e+01 : f32
    %12 = vector.broadcast %cst_5 : f32 to vector<8x1xf32>
    %13 = arith.divf %11, %12 : vector<8x1xf32>
    %14 = vector.broadcast %13 : vector<8x1xf32> to vector<8x32xf32>
    %15 = arith.subf %1, %14 : vector<8x32xf32>
    %16 = arith.mulf %15, %15 : vector<8x32xf32>
    %cst_6 = arith.constant dense<0.000000e+00> : vector<8xf32>
    %17 = vector.multi_reduction <add>, %16, %cst_6 [1] : vector<8x32xf32> to vector<8xf32>
    %18 = vector.shape_cast %17 : vector<8xf32> to vector<8x1xf32>
    %cst_7 = arith.constant 3.200000e+01 : f32
    %19 = vector.broadcast %cst_7 : f32 to vector<8x1xf32>
    %20 = arith.divf %18, %19 : vector<8x1xf32>
    %21 = vector.broadcast %13 : vector<8x1xf32> to vector<8x32xf32>
    %22 = arith.subf %1, %21 : vector<8x32xf32>
    %cst_8 = arith.constant 9.99999974E-6 : f32
    %23 = vector.broadcast %cst_8 : f32 to vector<8x1xf32>
    %24 = arith.addf %20, %23 : vector<8x1xf32>
    %25 = math.rsqrt %24 : vector<8x1xf32>
    %26 = vector.broadcast %25 : vector<8x1xf32> to vector<8x32xf32>
    %27 = arith.mulf %22, %26 : vector<8x32xf32>
    %c0_9 = arith.constant 0 : index
    %c0_10 = arith.constant 0 : index
    %28 = vector.load %arg3[%c0_9, %c0_10] : memref<1x32xf32, #tpu.memory_space<vmem>>, vector<1x32xf32>
    %29 = vector.broadcast %28 : vector<1x32xf32> to vector<8x32xf32>
    %30 = arith.mulf %27, %29 : vector<8x32xf32>
    %c0_11 = arith.constant 0 : index
    %c0_12 = arith.constant 0 : index
    %31 = vector.load %arg4[%c0_11, %c0_12] : memref<1x32xf32, #tpu.memory_space<vmem>>, vector<1x32xf32>
    %32 = vector.broadcast %31 : vector<1x32xf32> to vector<8x32xf32>
    %33 = arith.addf %30, %32 : vector<8x32xf32>
    %cst_13 = arith.constant 1.000000e+00 : f32
    %34 = vector.broadcast %cst_13 : f32 to vector<1x32xf32>
    %35 = arith.addf %34, %4 : vector<1x32xf32>
    %36 = vector.broadcast %35 : vector<1x32xf32> to vector<8x32xf32>
    %37 = arith.mulf %33, %36 : vector<8x32xf32>
    %38 = vector.broadcast %5 : vector<1x32xf32> to vector<8x32xf32>
    %39 = arith.addf %37, %38 : vector<8x32xf32>
    %c0_14 = arith.constant 0 : index
    %c0_15 = arith.constant 0 : index
    %40 = vector.load %arg7[%c0_14, %c0_15] : memref<32x192xf32, #tpu.memory_space<vmem>>, vector<32x192xf32>
    %cst_16 = arith.constant dense<0.000000e+00> : vector<8x192xf32>
    %41 = tpu.matmul %39, %40, %cst_16 {dimension_numbers = #tpu.dot_dimension_numbers<[1], [0], [0], [1], [0, 0, 1, 1], [], []>} : vector<8x32xf32>, vector<32x192xf32>, vector<8x192xf32> -> vector<8x192xf32>
    %c0_17 = arith.constant 0 : index
    %c0_18 = arith.constant 0 : index
    %42 = vector.load %arg8[%c0_17, %c0_18] : memref<1x192xf32, #tpu.memory_space<vmem>>, vector<1x192xf32>
    %43 = vector.broadcast %42 : vector<1x192xf32> to vector<8x192xf32>
    %44 = arith.addf %41, %43 : vector<8x192xf32>
    %45 = vector.extract_strided_slice %44 {offsets = [0, 0], sizes = [8, 32], strides = [1, 1]} : vector<8x192xf32> to vector<8x32xf32>
    %cst_19 = arith.constant 0.353553385 : f32
    %46 = vector.broadcast %cst_19 : f32 to vector<8x32xf32>
    %47 = arith.mulf %45, %46 : vector<8x32xf32>
    %48 = vector.extract_strided_slice %44 {offsets = [0, 64], sizes = [8, 32], strides = [1, 1]} : vector<8x192xf32> to vector<8x32xf32>
    %49 = vector.extract_strided_slice %44 {offsets = [0, 128], sizes = [8, 32], strides = [1, 1]} : vector<8x192xf32> to vector<8x32xf32>
    %cst_20 = arith.constant dense<0.000000e+00> : vector<8x8xf32>
    %50 = tpu.matmul %47, %48, %cst_20 {dimension_numbers = #tpu.dot_dimension_numbers<[1], [1], [0], [0], [0, 0, 1, 0], [], []>} : vector<8x32xf32>, vector<8x32xf32>, vector<8x8xf32> -> vector<8x8xf32>
    %cst_21 = arith.constant dense<0xFF800000> : vector<8xf32>
    %51 = vector.multi_reduction <maximumf>, %50, %cst_21 [1] : vector<8x8xf32> to vector<8xf32>
    %52 = vector.shape_cast %51 : vector<8xf32> to vector<8x1xf32>
    %53 = vector.broadcast %52 : vector<8x1xf32> to vector<8x8xf32>
    %54 = arith.subf %50, %53 : vector<8x8xf32>
    %55 = math.exp %54 : vector<8x8xf32>
    %cst_22 = arith.constant dense<0.000000e+00> : vector<8xf32>
    %56 = vector.multi_reduction <add>, %55, %cst_22 [1] : vector<8x8xf32> to vector<8xf32>
    %57 = vector.shape_cast %56 : vector<8xf32> to vector<8x1xf32>
    %58 = tpu.reciprocal %57 {approx = true} : vector<8x1xf32> -> vector<8x1xf32>
    %59 = vector.broadcast %58 : vector<8x1xf32> to vector<8x8xf32>
    %60 = arith.mulf %55, %59 : vector<8x8xf32>
    %cst_23 = arith.constant dense<0.000000e+00> : vector<8x32xf32>
    %61 = tpu.matmul %60, %49, %cst_23 {dimension_numbers = #tpu.dot_dimension_numbers<[1], [0], [0], [1], [0, 0, 1, 1], [], []>} : vector<8x8xf32>, vector<8x32xf32>, vector<8x32xf32> -> vector<8x32xf32>
    %c0_24 = arith.constant 0 : index
    %c0_25 = arith.constant 0 : index
    %62 = vector.load %arg16[%c0_24, %c0_25] : memref<8x64xf32, #tpu.memory_space<vmem>>, vector<8x32xf32>
    tpu.vector_store %arg16[%c0_24, %c0_25], %61 {strides = array<i32>} : memref<8x64xf32, #tpu.memory_space<vmem>>, vector<8x32xf32>,
    %63 = vector.extract_strided_slice %44 {offsets = [0, 32], sizes = [8, 32], strides = [1, 1]} : vector<8x192xf32> to vector<8x32xf32>
    %cst_26 = arith.constant 0.353553385 : f32
    %64 = vector.broadcast %cst_26 : f32 to vector<8x32xf32>
    %65 = arith.mulf %63, %64 : vector<8x32xf32>
    %66 = vector.extract_strided_slice %44 {offsets = [0, 96], sizes = [8, 32], strides = [1, 1]} : vector<8x192xf32> to vector<8x32xf32>
    %67 = vector.extract_strided_slice %44 {offsets = [0, 160], sizes = [8, 32], strides = [1, 1]} : vector<8x192xf32> to vector<8x32xf32>
    %cst_27 = arith.constant dense<0.000000e+00> : vector<8x8xf32>
    %68 = tpu.matmul %65, %66, %cst_27 {dimension_numbers = #tpu.dot_dimension_numbers<[1], [1], [0], [0], [0, 0, 1, 0], [], []>} : vector<8x32xf32>, vector<8x32xf32>, vector<8x8xf32> -> vector<8x8xf32>
    %cst_28 = arith.constant dense<0xFF800000> : vector<8xf32>
    %69 = vector.multi_reduction <maximumf>, %68, %cst_28 [1] : vector<8x8xf32> to vector<8xf32>
    %70 = vector.shape_cast %69 : vector<8xf32> to vector<8x1xf32>
    %71 = vector.broadcast %70 : vector<8x1xf32> to vector<8x8xf32>
    %72 = arith.subf %68, %71 : vector<8x8xf32>
    %73 = math.exp %72 : vector<8x8xf32>
    %cst_29 = arith.constant dense<0.000000e+00> : vector<8xf32>
    %74 = vector.multi_reduction <add>, %73, %cst_29 [1] : vector<8x8xf32> to vector<8xf32>
    %75 = vector.shape_cast %74 : vector<8xf32> to vector<8x1xf32>
    %76 = tpu.reciprocal %75 {approx = true} : vector<8x1xf32> -> vector<8x1xf32>
    %77 = vector.broadcast %76 : vector<8x1xf32> to vector<8x8xf32>
    %78 = arith.mulf %73, %77 : vector<8x8xf32>
    %cst_30 = arith.constant dense<0.000000e+00> : vector<8x32xf32>
    %79 = tpu.matmul %78, %67, %cst_30 {dimension_numbers = #tpu.dot_dimension_numbers<[1], [0], [0], [1], [0, 0, 1, 1], [], []>} : vector<8x8xf32>, vector<8x32xf32>, vector<8x32xf32> -> vector<8x32xf32>
    %c0_31 = arith.constant 0 : index
    %c32 = arith.constant 32 : index
    %80 = vector.load %arg16[%c0_31, %c32] : memref<8x64xf32, #tpu.memory_space<vmem>>, vector<8x32xf32>
    tpu.vector_store %arg16[%c0_31, %c32], %79 {strides = array<i32>} : memref<8x64xf32, #tpu.memory_space<vmem>>, vector<8x32xf32>,
    %c0_32 = arith.constant 0 : index
    %c0_33 = arith.constant 0 : index
    %81 = vector.load %arg16[%c0_32, %c0_33] : memref<8x64xf32, #tpu.memory_space<vmem>>, vector<8x64xf32>
    %c0_34 = arith.constant 0 : index
    %c0_35 = arith.constant 0 : index
    %82 = vector.load %arg9[%c0_34, %c0_35] : memref<64x32xf32, #tpu.memory_space<vmem>>, vector<64x32xf32>
    %cst_36 = arith.constant dense<0.000000e+00> : vector<8x32xf32>
    %83 = tpu.matmul %81, %82, %cst_36 {dimension_numbers = #tpu.dot_dimension_numbers<[1], [0], [0], [1], [0, 0, 1, 1], [], []>} : vector<8x64xf32>, vector<64x32xf32>, vector<8x32xf32> -> vector<8x32xf32>
    %c0_37 = arith.constant 0 : index
    %c0_38 = arith.constant 0 : index
    %84 = vector.load %arg10[%c0_37, %c0_38] : memref<1x32xf32, #tpu.memory_space<vmem>>, vector<1x32xf32>
    %85 = vector.broadcast %84 : vector<1x32xf32> to vector<8x32xf32>
    %86 = arith.addf %83, %85 : vector<8x32xf32>
    %87 = vector.broadcast %6 : vector<1x32xf32> to vector<8x32xf32>
    %88 = arith.mulf %86, %87 : vector<8x32xf32>
    %89 = arith.addf %1, %88 : vector<8x32xf32>
    %cst_39 = arith.constant dense<0.000000e+00> : vector<8xf32>
    %90 = vector.multi_reduction <add>, %89, %cst_39 [1] : vector<8x32xf32> to vector<8xf32>
    %91 = vector.shape_cast %90 : vector<8xf32> to vector<8x1xf32>
    %cst_40 = arith.constant 3.200000e+01 : f32
    %92 = vector.broadcast %cst_40 : f32 to vector<8x1xf32>
    %93 = arith.divf %91, %92 : vector<8x1xf32>
    %94 = vector.broadcast %93 : vector<8x1xf32> to vector<8x32xf32>
    %95 = arith.subf %89, %94 : vector<8x32xf32>
    %96 = arith.mulf %95, %95 : vector<8x32xf32>
    %cst_41 = arith.constant dense<0.000000e+00> : vector<8xf32>
    %97 = vector.multi_reduction <add>, %96, %cst_41 [1] : vector<8x32xf32> to vector<8xf32>
    %98 = vector.shape_cast %97 : vector<8xf32> to vector<8x1xf32>
    %cst_42 = arith.constant 3.200000e+01 : f32
    %99 = vector.broadcast %cst_42 : f32 to vector<8x1xf32>
    %100 = arith.divf %98, %99 : vector<8x1xf32>
    %101 = vector.broadcast %93 : vector<8x1xf32> to vector<8x32xf32>
    %102 = arith.subf %89, %101 : vector<8x32xf32>
    %cst_43 = arith.constant 9.99999974E-6 : f32
    %103 = vector.broadcast %cst_43 : f32 to vector<8x1xf32>
    %104 = arith.addf %100, %103 : vector<8x1xf32>
    %105 = math.rsqrt %104 : vector<8x1xf32>
    %106 = vector.broadcast %105 : vector<8x1xf32> to vector<8x32xf32>
    %107 = arith.mulf %102, %106 : vector<8x32xf32>
    %c0_44 = arith.constant 0 : index
    %c0_45 = arith.constant 0 : index
    %108 = vector.load %arg5[%c0_44, %c0_45] : memref<1x32xf32, #tpu.memory_space<vmem>>, vector<1x32xf32>
    %109 = vector.broadcast %108 : vector<1x32xf32> to vector<8x32xf32>
    %110 = arith.mulf %107, %109 : vector<8x32xf32>
    %c0_46 = arith.constant 0 : index
    %c0_47 = arith.constant 0 : index
    %111 = vector.load %arg6[%c0_46, %c0_47] : memref<1x32xf32, #tpu.memory_space<vmem>>, vector<1x32xf32>
    %112 = vector.broadcast %111 : vector<1x32xf32> to vector<8x32xf32>
    %113 = arith.addf %110, %112 : vector<8x32xf32>
    %cst_48 = arith.constant 1.000000e+00 : f32
    %114 = vector.broadcast %cst_48 : f32 to vector<1x32xf32>
    %115 = arith.addf %114, %7 : vector<1x32xf32>
    %116 = vector.broadcast %115 : vector<1x32xf32> to vector<8x32xf32>
    %117 = arith.mulf %113, %116 : vector<8x32xf32>
    %118 = vector.broadcast %8 : vector<1x32xf32> to vector<8x32xf32>
    %119 = arith.addf %117, %118 : vector<8x32xf32>
    %c0_49 = arith.constant 0 : index
    %c0_50 = arith.constant 0 : index
    %120 = vector.load %arg11[%c0_49, %c0_50] : memref<32x128xf32, #tpu.memory_space<vmem>>, vector<32x128xf32>
    %cst_51 = arith.constant dense<0.000000e+00> : vector<8x128xf32>
    %121 = tpu.matmul %119, %120, %cst_51 {dimension_numbers = #tpu.dot_dimension_numbers<[1], [0], [0], [1], [0, 0, 1, 1], [], []>} : vector<8x32xf32>, vector<32x128xf32>, vector<8x128xf32> -> vector<8x128xf32>
    %c0_52 = arith.constant 0 : index
    %c0_53 = arith.constant 0 : index
    %122 = vector.load %arg12[%c0_52, %c0_53] : memref<1x128xf32, #tpu.memory_space<vmem>>, vector<1x128xf32>
    %123 = vector.broadcast %122 : vector<1x128xf32> to vector<8x128xf32>
    %124 = arith.addf %121, %123 : vector<8x128xf32>
    %cst_54 = arith.constant 0.000000e+00 : f32
    %125 = vector.broadcast %cst_54 : f32 to vector<8x128xf32>
    %126 = arith.maximumf %124, %125 : vector<8x128xf32>
    %c0_55 = arith.constant 0 : index
    %c0_56 = arith.constant 0 : index
    %127 = vector.load %arg13[%c0_55, %c0_56] : memref<128x32xf32, #tpu.memory_space<vmem>>, vector<128x32xf32>
    %cst_57 = arith.constant dense<0.000000e+00> : vector<8x32xf32>
    %128 = tpu.matmul %126, %127, %cst_57 {dimension_numbers = #tpu.dot_dimension_numbers<[1], [0], [0], [1], [0, 0, 1, 1], [], []>} : vector<8x128xf32>, vector<128x32xf32>, vector<8x32xf32> -> vector<8x32xf32>
    %c0_58 = arith.constant 0 : index
    %c0_59 = arith.constant 0 : index
    %129 = vector.load %arg14[%c0_58, %c0_59] : memref<1x32xf32, #tpu.memory_space<vmem>>, vector<1x32xf32>
    %130 = vector.broadcast %129 : vector<1x32xf32> to vector<8x32xf32>
    %131 = arith.addf %128, %130 : vector<8x32xf32>
    %132 = vector.broadcast %9 : vector<1x32xf32> to vector<8x32xf32>
    %133 = arith.mulf %131, %132 : vector<8x32xf32>
    %134 = arith.addf %89, %133 : vector<8x32xf32>
    %c0_60 = arith.constant 0 : index
    %c0_61 = arith.constant 0 : index
    %c0_62 = arith.constant 0 : index
    %135 = vector.load %arg15[%c0_60, %c0_61, %c0_62] : memref<1x8x32xf32, #tpu.memory_space<vmem>>, vector<1x8x32xf32>
    %136 = vector.shape_cast %135 : vector<1x8x32xf32> to vector<8x32xf32>
    %137 = vector.shape_cast %134 : vector<8x32xf32> to vector<1x8x32xf32>
    tpu.vector_store %arg15[%c0_60, %c0_61, %c0_62], %137 {strides = array<i32>} : memref<1x8x32xf32, #tpu.memory_space<vmem>>, vector<1x8x32xf32>,
    return
  }
  func.func @transform_0(%arg0: i32) -> (i32, i32, i32) {
    %c0_i32 = arith.constant 0 : i32
    %c0_i32_0 = arith.constant 0 : i32
    %c0_i32_1 = arith.constant 0 : i32
    return %arg0, %c0_i32, %c0_i32_0 : i32, i32, i32
  }
  func.func @transform_1(%arg0: i32) -> (i32, i32, i32) {
    %c0_i32 = arith.constant 0 : i32
    %c0_i32_0 = arith.constant 0 : i32
    %c0_i32_1 = arith.constant 0 : i32
    return %arg0, %c0_i32, %c0_i32_0 : i32, i32, i32
  }
  func.func @transform_2(%arg0: i32) -> (i32, i32) {
    %c0_i32 = arith.constant 0 : i32
    %c0_i32_0 = arith.constant 0 : i32
    %c0_i32_1 = arith.constant 0 : i32
    return %c0_i32, %c0_i32_0 : i32, i32
  }
  func.func @transform_3(%arg0: i32) -> (i32, i32) {
    %c0_i32 = arith.constant 0 : i32
    %c0_i32_0 = arith.constant 0 : i32
    %c0_i32_1 = arith.constant 0 : i32
    return %c0_i32, %c0_i32_0 : i32, i32
  }
  func.func @transform_4(%arg0: i32) -> (i32, i32) {
    %c0_i32 = arith.constant 0 : i32
    %c0_i32_0 = arith.constant 0 : i32
    %c0_i32_1 = arith.constant 0 : i32
    return %c0_i32, %c0_i32_0 : i32, i32
  }
  func.func @transform_5(%arg0: i32) -> (i32, i32) {
    %c0_i32 = arith.constant 0 : i32
    %c0_i32_0 = arith.constant 0 : i32
    %c0_i32_1 = arith.constant 0 : i32
    return %c0_i32, %c0_i32_0 : i32, i32
  }
  func.func @transform_6(%arg0: i32) -> (i32, i32) {
    %c0_i32 = arith.constant 0 : i32
    %c0_i32_0 = arith.constant 0 : i32
    %c0_i32_1 = arith.constant 0 : i32
    return %c0_i32, %c0_i32_0 : i32, i32
  }
  func.func @transform_7(%arg0: i32) -> (i32, i32) {
    %c0_i32 = arith.constant 0 : i32
    %c0_i32_0 = arith.constant 0 : i32
    %c0_i32_1 = arith.constant 0 : i32
    return %c0_i32, %c0_i32_0 : i32, i32
  }
  func.func @transform_8(%arg0: i32) -> (i32, i32) {
    %c0_i32 = arith.constant 0 : i32
    %c0_i32_0 = arith.constant 0 : i32
    %c0_i32_1 = arith.constant 0 : i32
    return %c0_i32, %c0_i32_0 : i32, i32
  }
  func.func @transform_9(%arg0: i32) -> (i32, i32) {
    %c0_i32 = arith.constant 0 : i32
    %c0_i32_0 = arith.constant 0 : i32
    %c0_i32_1 = arith.constant 0 : i32
    return %c0_i32, %c0_i32_0 : i32, i32
  }
  func.func @transform_10(%arg0: i32) -> (i32, i32) {
    %c0_i32 = arith.constant 0 : i32
    %c0_i32_0 = arith.constant 0 : i32
    %c0_i32_1 = arith.constant 0 : i32
    return %c0_i32, %c0_i32_0 : i32, i32
  }
  func.func @transform_11(%arg0: i32) -> (i32, i32) {
    %c0_i32 = arith.constant 0 : i32
    %c0_i32_0 = arith.constant 0 : i32
    %c0_i32_1 = arith.constant 0 : i32
    return %c0_i32, %c0_i32_0 : i32, i32
  }
  func.func @transform_12(%arg0: i32) -> (i32, i32) {
    %c0_i32 = arith.constant 0 : i32
    %c0_i32_0 = arith.constant 0 : i32
    %c0_i32_1 = arith.constant 0 : i32
    return %c0_i32, %c0_i32_0 : i32, i32
  }
  func.func @transform_13(%arg0: i32) -> (i32, i32) {
    %c0_i32 = arith.constant 0 : i32
    %c0_i32_0 = arith.constant 0 : i32
    %c0_i32_1 = arith.constant 0 : i32
    return %c0_i32, %c0_i32_0 : i32, i32
  }
  func.func @transform_14(%arg0: i32) -> (i32, i32, i32) {
    %c0_i32 = arith.constant 0 : i32
    %c0_i32_0 = arith.constant 0 : i32
    %c0_i32_1 = arith.constant 0 : i32
    return %arg0, %c0_i32, %c0_i32_0 : i32, i32, i32
  }
}

</mosaic_0001>

<llo_original>
// kernel: tpu_custom_call.1
$region0: #{tpu_custom_call.1}
  #allocation0 [shape = 'u32[]', space=smem, size = 0x4, offset = 0x4, fixed_abs, tag = 'smem constant byte address 0x4 - core index']
  #allocation1 [shape = 'u32[72,128]{1,0:T(1,128)}', space=vmem, size = 0x9000, scoped, tag = 'internal scratch']
  #allocation2 [shape = 'f32[8,64]{1,0:T(8,128)}', space=vmem, size = 0x1000, scoped, tag = 'scratch operand']
  %s0 = inlined_call_operand.vmem [shape: f32[2,8,32], index: 0, kind: input, shape index: {}]
  %s1 = inlined_call_operand.vmem [shape: f32[2,6,32], index: 1, kind: input, shape index: {}]
  %s2 = inlined_call_operand.vmem [shape: f32[1,32], index: 2, kind: input, shape index: {}]
  %s3 = inlined_call_operand.vmem [shape: f32[1,32], index: 3, kind: input, shape index: {}]
  %s4 = inlined_call_operand.vmem [shape: f32[1,32], index: 4, kind: input, shape index: {}]
  %s5 = inlined_call_operand.vmem [shape: f32[1,32], index: 5, kind: input, shape index: {}]
  %s6 = inlined_call_operand.vmem [shape: f32[32,192], index: 6, kind: input, shape index: {}]
  %s7 = inlined_call_operand.vmem [shape: f32[1,192], index: 7, kind: input, shape index: {}]
  %s8 = inlined_call_operand.vmem [shape: f32[64,32], index: 8, kind: input, shape index: {}]
  %s9 = inlined_call_operand.vmem [shape: f32[1,32], index: 9, kind: input, shape index: {}]
  %s10 = inlined_call_operand.vmem [shape: f32[32,128], index: 10, kind: input, shape index: {}]
  %s11 = inlined_call_operand.vmem [shape: f32[1,128], index: 11, kind: input, shape index: {}]
  %s12 = inlined_call_operand.vmem [shape: f32[128,32], index: 12, kind: input, shape index: {}]
  %s13 = inlined_call_operand.vmem [shape: f32[1,32], index: 13, kind: input, shape index: {}]
  %s14 = inlined_call_operand.hbm [shape: f32[2,8,32], index: 14, kind: output, shape index: {}]
  %s15 = sld [smem:[#allocation0]]
  $region89: #{tpu_custom_call.1} parent=0
    _
  %s17 = ssub.s32 1, %s15
  %s18 = scalar_select 0, %s17, %s15
  $region1: #{tpu_custom_call.1} parent=0
    #allocation3 [shape = 'u8[8192]{0}', space=vmem, size = 0x2000, scoped, tag = 'output window, operand 0']
    #allocation4 [shape = 's32[2]{0}', space=sflag, size = 0x8, scoped, tag = 'scoped memory for tpu_custom_call.1']
    %19 = vsyncpa [#allocation4], 0
    %s20 = scalar_lea.sflag [#allocation4], 1
    %21 = vsyncpa %s20, 0
    loop: start=0, step=1, limit=4
    $region2: #{tpu_custom_call.1} parent=1 // loop_pre_header
      _
    $region3: #{tpu_custom_call.1} parent=1 // loop_header
      %s23 = sphi 0, %s27
      %p24 = scmp.ge.s32.totalorder %s23, 4
      %s33 = sphi 0, %s35
      %s36 = sphi 0, %s33
      %s37 = sphi 0, %s36
      %s53 = sphi 0, %s37
      %s59 = sphi 0, %s61
      %s62 = sphi 0, %s59
      %s63 = sphi 0, %s62
      %s79 = sphi 0, %s63
      %s83 = sphi 0, %s83
      %s85 = sphi 0, %s83
      %s86 = sphi 0, %s85
      %s100 = sphi 0, %s86
      %s104 = sphi 0, %s104
      %s106 = sphi 0, %s104
      %s107 = sphi 0, %s106
      %s121 = sphi 0, %s107
      %s125 = sphi 0, %s125
      %s127 = sphi 0, %s125
      %s128 = sphi 0, %s127
      %s142 = sphi 0, %s128
      %s146 = sphi 0, %s146
      %s148 = sphi 0, %s146
      %s149 = sphi 0, %s148
      %s163 = sphi 0, %s149
      %s167 = sphi 0, %s167
      %s169 = sphi 0, %s167
      %s170 = sphi 0, %s169
      %s184 = sphi 0, %s170
      %s188 = sphi 0, %s188
      %s190 = sphi 0, %s188
      %s191 = sphi 0, %s190
      %s205 = sphi 0, %s191
      %s209 = sphi 0, %s209
      %s211 = sphi 0, %s209
      %s212 = sphi 0, %s211
      %s226 = sphi 0, %s212
      %s230 = sphi 0, %s230
      %s232 = sphi 0, %s230
      %s233 = sphi 0, %s232
      %s247 = sphi 0, %s233
      %s251 = sphi 0, %s251
      %s253 = sphi 0, %s251
      %s254 = sphi 0, %s253
      %s268 = sphi 0, %s254
      %s272 = sphi 0, %s272
      %s274 = sphi 0, %s272
      %s275 = sphi 0, %s274
      %s289 = sphi 0, %s275
      %s293 = sphi 0, %s293
      %s295 = sphi 0, %s293
      %s296 = sphi 0, %s295
      %s310 = sphi 0, %s296
      %s314 = sphi 0, %s314
      %s316 = sphi 0, %s314
      %s317 = sphi 0, %s316
      %s331 = sphi 0, %s317
      %s337 = sphi 0, %s339
      %s340 = sphi 0, %s337
      %s341 = sphi 0, %s340
      %s357 = sphi 0, %s341
    $region4: #{tpu_custom_call.1} parent=1 // loop_header_branch
      %26 = sbr.rel (%p24) target = $region8
    $region5: #{tpu_custom_call.1} parent=1 // loop_body
      %s28 = ssub.s32 %s23, 1
      %s29 = ssub.s32 %s23, 2
      %s30 = sadd.s32 %s23, 1
      %s31 = ssub.s32 %s23, %s30
      %p32 = scmp.eq.s32.totalorder %s31, 0
      %s34 = sadd.s32 %s33, 1
      %s35 = scalar_select %p32, %s33, %s34
      %p38 = pneg %p32
      %p39 = scmp.eq.s32.totalorder %s23, 1
      %p40 = por %p38, %p39
      %p41 = scmp.ne.s32.totalorder %s33, %s36
      %p42 = scmp.eq.s32.totalorder %s23, 0
      %p43 = por %p41, %p42
      %p44 = scmp.ne.s32.totalorder %s33, %s36
      %p45 = scmp.eq.s32.totalorder %s28, 1
      %p46 = por %p44, %p45
      %p47 = scmp.ne.s32.totalorder %s36, %s37
      %p48 = scmp.eq.s32.totalorder %s28, 0
      %p49 = por %p47, %p48
      %p50 = scmp.ne.s32.totalorder %s36, %s37
      %p51 = scmp.eq.s32.totalorder %s29, 1
      %p52 = por %p50, %p51
      %p54 = scmp.ne.s32.totalorder %s37, %s53
      %p55 = scmp.eq.s32.totalorder %s29, 0
      %p56 = por %p54, %p55
      %s57 = ssub.s32 %s23, %s30
      %p58 = scmp.eq.s32.totalorder %s57, 0
      %s60 = sadd.s32 %s59, 1
      %s61 = scalar_select %p58, %s59, %s60
      %p64 = pneg %p58
      %p65 = scmp.eq.s32.totalorder %s23, 1
      %p66 = por %p64, %p65
      %p67 = scmp.ne.s32.totalorder %s59, %s62
      %p68 = scmp.eq.s32.totalorder %s23, 0
      %p69 = por %p67, %p68
      %p70 = scmp.ne.s32.totalorder %s59, %s62
      %p71 = scmp.eq.s32.totalorder %s28, 1
      %p72 = por %p70, %p71
      %p73 = scmp.ne.s32.totalorder %s62, %s63
      %p74 = scmp.eq.s32.totalorder %s28, 0
      %p75 = por %p73, %p74
      %p76 = scmp.ne.s32.totalorder %s62, %s63
      %p77 = scmp.eq.s32.totalorder %s29, 1
      %p78 = por %p76, %p77
      %p80 = scmp.ne.s32.totalorder %s63, %s79
      %p81 = scmp.eq.s32.totalorder %s29, 0
      %p82 = por %p80, %p81
      %s84 = sadd.s32 %s83, 1
      %p87 = scmp.eq.s32.totalorder %s23, 1
      %p88 = scmp.ne.s32.totalorder %s83, %s85
      %p89 = scmp.eq.s32.totalorder %s23, 0
      %p90 = por %p88, %p89
      %p91 = scmp.ne.s32.totalorder %s83, %s85
      %p92 = scmp.eq.s32.totalorder %s28, 1
      %p93 = por %p91, %p92
      %p94 = scmp.ne.s32.totalorder %s85, %s86
      %p95 = scmp.eq.s32.totalorder %s28, 0
      %p96 = por %p94, %p95
      %p97 = scmp.ne.s32.totalorder %s85, %s86
      %p98 = scmp.eq.s32.totalorder %s29, 1
      %p99 = por %p97, %p98
      %p101 = scmp.ne.s32.totalorder %s86, %s100
      %p102 = scmp.eq.s32.totalorder %s29, 0
      %p103 = por %p101, %p102
      %s105 = sadd.s32 %s104, 1
      %p108 = scmp.eq.s32.totalorder %s23, 1
      %p109 = scmp.ne.s32.totalorder %s104, %s106
      %p110 = scmp.eq.s32.totalorder %s23, 0
      %p111 = por %p109, %p110
      %p112 = scmp.ne.s32.totalorder %s104, %s106
      %p113 = scmp.eq.s32.totalorder %s28, 1
      %p114 = por %p112, %p113
      %p115 = scmp.ne.s32.totalorder %s106, %s107
      %p116 = scmp.eq.s32.totalorder %s28, 0
      %p117 = por %p115, %p116
      %p118 = scmp.ne.s32.totalorder %s106, %s107
      %p119 = scmp.eq.s32.totalorder %s29, 1
      %p120 = por %p118, %p119
      %p122 = scmp.ne.s32.totalorder %s107, %s121
      %p123 = scmp.eq.s32.totalorder %s29, 0
      %p124 = por %p122, %p123
      %s126 = sadd.s32 %s125, 1
      %p129 = scmp.eq.s32.totalorder %s23, 1
      %p130 = scmp.ne.s32.totalorder %s125, %s127
      %p131 = scmp.eq.s32.totalorder %s23, 0
      %p132 = por %p130, %p131
      %p133 = scmp.ne.s32.totalorder %s125, %s127
      %p134 = scmp.eq.s32.totalorder %s28, 1
      %p135 = por %p133, %p134
      %p136 = scmp.ne.s32.totalorder %s127, %s128
      %p137 = scmp.eq.s32.totalorder %s28, 0
      %p138 = por %p136, %p137
      %p139 = scmp.ne.s32.totalorder %s127, %s128
      %p140 = scmp.eq.s32.totalorder %s29, 1
      %p141 = por %p139, %p140
      %p143 = scmp.ne.s32.totalorder %s128, %s142
      %p144 = scmp.eq.s32.totalorder %s29, 0
      %p145 = por %p143, %p144
      %s147 = sadd.s32 %s146, 1
      %p150 = scmp.eq.s32.totalorder %s23, 1
      %p151 = scmp.ne.s32.totalorder %s146, %s148
      %p152 = scmp.eq.s32.totalorder %s23, 0
      %p153 = por %p151, %p152
      %p154 = scmp.ne.s32.totalorder %s146, %s148
      %p155 = scmp.eq.s32.totalorder %s28, 1
      %p156 = por %p154, %p155
      %p157 = scmp.ne.s32.totalorder %s148, %s149
      %p158 = scmp.eq.s32.totalorder %s28, 0
      %p159 = por %p157, %p158
      %p160 = scmp.ne.s32.totalorder %s148, %s149
      %p161 = scmp.eq.s32.totalorder %s29, 1
      %p162 = por %p160, %p161
      %p164 = scmp.ne.s32.totalorder %s149, %s163
      %p165 = scmp.eq.s32.totalorder %s29, 0
      %p166 = por %p164, %p165
      %s168 = sadd.s32 %s167, 1
      %p171 = scmp.eq.s32.totalorder %s23, 1
      %p172 = scmp.ne.s32.totalorder %s167, %s169
      %p173 = scmp.eq.s32.totalorder %s23, 0
      %p174 = por %p172, %p173
      %p175 = scmp.ne.s32.totalorder %s167, %s169
      %p176 = scmp.eq.s32.totalorder %s28, 1
      %p177 = por %p175, %p176
      %p178 = scmp.ne.s32.totalorder %s169, %s170
      %p179 = scmp.eq.s32.totalorder %s28, 0
      %p180 = por %p178, %p179
      %p181 = scmp.ne.s32.totalorder %s169, %s170
      %p182 = scmp.eq.s32.totalorder %s29, 1
      %p183 = por %p181, %p182
      %p185 = scmp.ne.s32.totalorder %s170, %s184
      %p186 = scmp.eq.s32.totalorder %s29, 0
      %p187 = por %p185, %p186
      %s189 = sadd.s32 %s188, 1
      %p192 = scmp.eq.s32.totalorder %s23, 1
      %p193 = scmp.ne.s32.totalorder %s188, %s190
      %p194 = scmp.eq.s32.totalorder %s23, 0
      %p195 = por %p193, %p194
      %p196 = scmp.ne.s32.totalorder %s188, %s190
      %p197 = scmp.eq.s32.totalorder %s28, 1
      %p198 = por %p196, %p197
      %p199 = scmp.ne.s32.totalorder %s190, %s191
      %p200 = scmp.eq.s32.totalorder %s28, 0
      %p201 = por %p199, %p200
      %p202 = scmp.ne.s32.totalorder %s190, %s191
      %p203 = scmp.eq.s32.totalorder %s29, 1
      %p204 = por %p202, %p203
      %p206 = scmp.ne.s32.totalorder %s191, %s205
      %p207 = scmp.eq.s32.totalorder %s29, 0
      %p208 = por %p206, %p207
      %s210 = sadd.s32 %s209, 1
      %p213 = scmp.eq.s32.totalorder %s23, 1
      %p214 = scmp.ne.s32.totalorder %s209, %s211
      %p215 = scmp.eq.s32.totalorder %s23, 0
      %p216 = por %p214, %p215
      %p217 = scmp.ne.s32.totalorder %s209, %s211
      %p218 = scmp.eq.s32.totalorder %s28, 1
      %p219 = por %p217, %p218
      %p220 = scmp.ne.s32.totalorder %s211, %s212
      %p221 = scmp.eq.s32.totalorder %s28, 0
      %p222 = por %p220, %p221
      %p223 = scmp.ne.s32.totalorder %s211, %s212
      %p224 = scmp.eq.s32.totalorder %s29, 1
      %p225 = por %p223, %p224
      %p227 = scmp.ne.s32.totalorder %s212, %s226
      %p228 = scmp.eq.s32.totalorder %s29, 0
      %p229 = por %p227, %p228
      %s231 = sadd.s32 %s230, 1
      %p234 = scmp.eq.s32.totalorder %s23, 1
      %p235 = scmp.ne.s32.totalorder %s230, %s232
      %p236 = scmp.eq.s32.totalorder %s23, 0
      %p237 = por %p235, %p236
      %p238 = scmp.ne.s32.totalorder %s230, %s232
      %p239 = scmp.eq.s32.totalorder %s28, 1
      %p240 = por %p238, %p239
      %p241 = scmp.ne.s32.totalorder %s232, %s233
      %p242 = scmp.eq.s32.totalorder %s28, 0
      %p243 = por %p241, %p242
      %p244 = scmp.ne.s32.totalorder %s232, %s233
      %p245 = scmp.eq.s32.totalorder %s29, 1
      %p246 = por %p244, %p245
      %p248 = scmp.ne.s32.totalorder %s233, %s247
      %p249 = scmp.eq.s32.totalorder %s29, 0
      %p250 = por %p248, %p249
      %s252 = sadd.s32 %s251, 1
      %p255 = scmp.eq.s32.totalorder %s23, 1
      %p256 = scmp.ne.s32.totalorder %s251, %s253
      %p257 = scmp.eq.s32.totalorder %s23, 0
      %p258 = por %p256, %p257
      %p259 = scmp.ne.s32.totalorder %s251, %s253
      %p260 = scmp.eq.s32.totalorder %s28, 1
      %p261 = por %p259, %p260
      %p262 = scmp.ne.s32.totalorder %s253, %s254
      %p263 = scmp.eq.s32.totalorder %s28, 0
      %p264 = por %p262, %p263
      %p265 = scmp.ne.s32.totalorder %s253, %s254
      %p266 = scmp.eq.s32.totalorder %s29, 1
      %p267 = por %p265, %p266
      %p269 = scmp.ne.s32.totalorder %s254, %s268
      %p270 = scmp.eq.s32.totalorder %s29, 0
      %p271 = por %p269, %p270
      %s273 = sadd.s32 %s272, 1
      %p276 = scmp.eq.s32.totalorder %s23, 1
      %p277 = scmp.ne.s32.totalorder %s272, %s274
      %p278 = scmp.eq.s32.totalorder %s23, 0
      %p279 = por %p277, %p278
      %p280 = scmp.ne.s32.totalorder %s272, %s274
      %p281 = scmp.eq.s32.totalorder %s28, 1
      %p282 = por %p280, %p281
      %p283 = scmp.ne.s32.totalorder %s274, %s275
      %p284 = scmp.eq.s32.totalorder %s28, 0
      %p285 = por %p283, %p284
      %p286 = scmp.ne.s32.totalorder %s274, %s275
      %p287 = scmp.eq.s32.totalorder %s29, 1
      %p288 = por %p286, %p287
      %p290 = scmp.ne.s32.totalorder %s275, %s289
      %p291 = scmp.eq.s32.totalorder %s29, 0
      %p292 = por %p290, %p291
      %s294 = sadd.s32 %s293, 1
      %p297 = scmp.eq.s32.totalorder %s23, 1
      %p298 = scmp.ne.s32.totalorder %s293, %s295
      %p299 = scmp.eq.s32.totalorder %s23, 0
      %p300 = por %p298, %p299
      %p301 = scmp.ne.s32.totalorder %s293, %s295
      %p302 = scmp.eq.s32.totalorder %s28, 1
      %p303 = por %p301, %p302
      %p304 = scmp.ne.s32.totalorder %s295, %s296
      %p305 = scmp.eq.s32.totalorder %s28, 0
      %p306 = por %p304, %p305
      %p307 = scmp.ne.s32.totalorder %s295, %s296
      %p308 = scmp.eq.s32.totalorder %s29, 1
      %p309 = por %p307, %p308
      %p311 = scmp.ne.s32.totalorder %s296, %s310
      %p312 = scmp.eq.s32.totalorder %s29, 0
      %p313 = por %p311, %p312
      %s315 = sadd.s32 %s314, 1
      %p318 = scmp.eq.s32.totalorder %s23, 1
      %p319 = scmp.ne.s32.totalorder %s314, %s316
      %p320 = scmp.eq.s32.totalorder %s23, 0
      %p321 = por %p319, %p320
      %p322 = scmp.ne.s32.totalorder %s314, %s316
      %p323 = scmp.eq.s32.totalorder %s28, 1
      %p324 = por %p322, %p323
      %p325 = scmp.ne.s32.totalorder %s316, %s317
      %p326 = scmp.eq.s32.totalorder %s28, 0
      %p327 = por %p325, %p326
      %p328 = scmp.ne.s32.totalorder %s316, %s317
      %p329 = scmp.eq.s32.totalorder %s29, 1
      %p330 = por %p328, %p329
      %p332 = scmp.ne.s32.totalorder %s317, %s331
      %p333 = scmp.eq.s32.totalorder %s29, 0
      %p334 = por %p332, %p333
      %s335 = ssub.s32 %s23, %s30
      %p336 = scmp.eq.s32.totalorder %s335, 0
      %s338 = sadd.s32 %s337, 1
      %s339 = scalar_select %p336, %s337, %s338
      %p342 = pneg %p336
      %p343 = scmp.eq.s32.totalorder %s23, 1
      %p344 = por %p342, %p343
      %p345 = scmp.ne.s32.totalorder %s337, %s340
      %p346 = scmp.eq.s32.totalorder %s23, 0
      %p347 = por %p345, %p346
      %p348 = scmp.ne.s32.totalorder %s337, %s340
      %p349 = scmp.eq.s32.totalorder %s28, 1
      %p350 = por %p348, %p349
      %p351 = scmp.ne.s32.totalorder %s340, %s341
      %p352 = scmp.eq.s32.totalorder %s28, 0
      %p353 = por %p351, %p352
      %p354 = scmp.ne.s32.totalorder %s340, %s341
      %p355 = scmp.eq.s32.totalorder %s29, 1
      %p356 = por %p354, %p355
      %p358 = scmp.ne.s32.totalorder %s341, %s357
      %p359 = scmp.eq.s32.totalorder %s29, 0
      %p360 = por %p358, %p359
      %p361 = scmp.le.s32.totalorder 1, %s23
      %p362 = scmp.lt.s32.totalorder %s23, 3
      %p363 = pnand %p361, %p362
      %p364 = pneg %p363
      // Predicated region
      $region9: #{tpu_custom_call.1} parent=5 // pred_check
        _
      $region10: #{tpu_custom_call.1} parent=5 // pred_check_branch
        %366 = sbr.rel (%p363) target = $region12
      $region11: #{tpu_custom_call.1} parent=5 // pred_region
        %s367 = ssub.s32 %s23, 1
        // Predicated region
        $region13: #{tpu_custom_call.1} parent=11 // pred_check
          %p368 = pneg %p96
        $region14: #{tpu_custom_call.1} parent=11 // pred_check_branch
          %370 = sbr.rel (%p368) target = $region16
        $region15: #{tpu_custom_call.1} parent=11 // pred_region
          _
        $region16: #{tpu_custom_call.1} parent=11 // pred_fallthru
          _
        // Predicated region
        $region17: #{tpu_custom_call.1} parent=11 // pred_check
          %p371 = pneg %p117
        $region18: #{tpu_custom_call.1} parent=11 // pred_check_branch
          %373 = sbr.rel (%p371) target = $region20
        $region19: #{tpu_custom_call.1} parent=11 // pred_region
          _
        $region20: #{tpu_custom_call.1} parent=11 // pred_fallthru
          _
        // Predicated region
        $region21: #{tpu_custom_call.1} parent=11 // pred_check
          %p374 = pneg %p138
        $region22: #{tpu_custom_call.1} parent=11 // pred_check_branch
          %376 = sbr.rel (%p374) target = $region24
        $region23: #{tpu_custom_call.1} parent=11 // pred_region
          _
        $region24: #{tpu_custom_call.1} parent=11 // pred_fallthru
          _
        // Predicated region
        $region25: #{tpu_custom_call.1} parent=11 // pred_check
          %p377 = pneg %p159
        $region26: #{tpu_custom_call.1} parent=11 // pred_check_branch
          %379 = sbr.rel (%p377) target = $region28
        $region27: #{tpu_custom_call.1} parent=11 // pred_region
          _
        $region28: #{tpu_custom_call.1} parent=11 // pred_fallthru
          _
        // Predicated region
        $region29: #{tpu_custom_call.1} parent=11 // pred_check
          %p380 = pneg %p180
        $region30: #{tpu_custom_call.1} parent=11 // pred_check_branch
          %382 = sbr.rel (%p380) target = $region32
        $region31: #{tpu_custom_call.1} parent=11 // pred_region
          _
        $region32: #{tpu_custom_call.1} parent=11 // pred_fallthru
          _
        // Predicated region
        $region33: #{tpu_custom_call.1} parent=11 // pred_check
          %p383 = pneg %p201
        $region34: #{tpu_custom_call.1} parent=11 // pred_check_branch
          %385 = sbr.rel (%p383) target = $region36
        $region35: #{tpu_custom_call.1} parent=11 // pred_region
          _
        $region36: #{tpu_custom_call.1} parent=11 // pred_fallthru
          _
        // Predicated region
        $region37: #{tpu_custom_call.1} parent=11 // pred_check
          %p386 = pneg %p222
        $region38: #{tpu_custom_call.1} parent=11 // pred_check_branch
          %388 = sbr.rel (%p386) target = $region40
        $region39: #{tpu_custom_call.1} parent=11 // pred_region
          _
        $region40: #{tpu_custom_call.1} parent=11 // pred_fallthru
          _
        // Predicated region
        $region41: #{tpu_custom_call.1} parent=11 // pred_check
          %p389 = pneg %p243
        $region42: #{tpu_custom_call.1} parent=11 // pred_check_branch
          %391 = sbr.rel (%p389) target = $region44
        $region43: #{tpu_custom_call.1} parent=11 // pred_region
          _
        $region44: #{tpu_custom_call.1} parent=11 // pred_fallthru
          _
        // Predicated region
        $region45: #{tpu_custom_call.1} parent=11 // pred_check
          %p392 = pneg %p264
        $region46: #{tpu_custom_call.1} parent=11 // pred_check_branch
          %394 = sbr.rel (%p392) target = $region48
        $region47: #{tpu_custom_call.1} parent=11 // pred_region
          _
        $region48: #{tpu_custom_call.1} parent=11 // pred_fallthru
          _
        // Predicated region
        $region49: #{tpu_custom_call.1} parent=11 // pred_check
          %p395 = pneg %p285
        $region50: #{tpu_custom_call.1} parent=11 // pred_check_branch
          %397 = sbr.rel (%p395) target = $region52
        $region51: #{tpu_custom_call.1} parent=11 // pred_region
          _
        $region52: #{tpu_custom_call.1} parent=11 // pred_fallthru
          _
        // Predicated region
        $region53: #{tpu_custom_call.1} parent=11 // pred_check
          %p398 = pneg %p306
        $region54: #{tpu_custom_call.1} parent=11 // pred_check_branch
          %400 = sbr.rel (%p398) target = $region56
        $region55: #{tpu_custom_call.1} parent=11 // pred_region
          _
        $region56: #{tpu_custom_call.1} parent=11 // pred_fallthru
          _
        // Predicated region
        $region57: #{tpu_custom_call.1} parent=11 // pred_check
          %p401 = pneg %p327
        $region58: #{tpu_custom_call.1} parent=11 // pred_check_branch
          %403 = sbr.rel (%p401) target = $region60
        $region59: #{tpu_custom_call.1} parent=11 // pred_region
          _
        $region60: #{tpu_custom_call.1} parent=11 // pred_fallthru
          _
      $region12: #{tpu_custom_call.1} parent=5 // pred_fallthru
        _
      %p404 = scmp.lt.s32.totalorder %s23, 2
      // Predicated region
      $region61: #{tpu_custom_call.1} parent=5 // pred_check
        %p405 = pneg %p404
      $region62: #{tpu_custom_call.1} parent=5 // pred_check_branch
        %407 = sbr.rel (%p405) target = $region64
      $region63: #{tpu_custom_call.1} parent=5 // pred_region
        // Predicated region
        $region65: #{tpu_custom_call.1} parent=63 // pred_check
          %p408 = pneg %p43
        $region66: #{tpu_custom_call.1} parent=63 // pred_check_branch
          %410 = sbr.rel (%p408) target = $region68
        $region67: #{tpu_custom_call.1} parent=63 // pred_region
          %p411 = scmp.lt.s32.totalorder %s23, 1
          %s412 = scalar_select %p411, %s23, 1
          %s413 = smul.addr %s412, 8
          %s414 = scalar_lea.vmem %s0, %s413
        $region68: #{tpu_custom_call.1} parent=63 // pred_fallthru
          _
        // Predicated region
        $region69: #{tpu_custom_call.1} parent=63 // pred_check
          %p415 = pneg %p69
        $region70: #{tpu_custom_call.1} parent=63 // pred_check_branch
          %417 = sbr.rel (%p415) target = $region72
        $region71: #{tpu_custom_call.1} parent=63 // pred_region
          %p418 = scmp.lt.s32.totalorder %s23, 1
          %s419 = scalar_select %p418, %s23, 1
          %s420 = smul.addr %s419, 8
          %s421 = scalar_lea.vmem %s1, %s420
        $region72: #{tpu_custom_call.1} parent=63 // pred_fallthru
          _
      $region64: #{tpu_custom_call.1} parent=5 // pred_fallthru
        _
      %p422 = scmp.le.s32.totalorder 1, %s23
      %p423 = scmp.lt.s32.totalorder %s23, 3
      %p424 = pnand %p422, %p423
      %p425 = pneg %p424
      // Predicated region
      $region73: #{tpu_custom_call.1} parent=5 // pred_check
        _
      $region74: #{tpu_custom_call.1} parent=5 // pred_check_branch
        %427 = sbr.rel (%p424) target = $region76
      $region75: #{tpu_custom_call.1} parent=5 // pred_region
        %s428 = ssub.s32 %s23, 1
        %p429 = scmp.lt.s32.totalorder %s28, 1
        %s430 = scalar_select %p429, %s28, 1
        %s431 = smul.addr %s430, 8
        %s432 = scalar_lea.vmem %s0, %s431
        %p433 = pneg %p49
        %p434 = pneg %p46
        %p435 = scmp.lt.s32.totalorder %s28, 1
        %s436 = scalar_select %p435, %s28, 1
        %s437 = smul.addr %s436, 8
        %s438 = scalar_lea.vmem %s1, %s437
        %p439 = pneg %p75
        %p440 = pneg %p72
        %p441 = pneg %p96
        %p442 = pneg %p93
        %p443 = pneg %p117
        %p444 = pneg %p114
        %p445 = pneg %p138
        %p446 = pneg %p135
        %p447 = pneg %p159
        %p448 = pneg %p156
        %p449 = pneg %p180
        %p450 = pneg %p177
        %p451 = pneg %p201
        %p452 = pneg %p198
        %p453 = pneg %p222
        %p454 = pneg %p219
        %p455 = pneg %p243
        %p456 = pneg %p240
        %p457 = pneg %p264
        %p458 = pneg %p261
        %p459 = pneg %p285
        %p460 = pneg %p282
        %p461 = pneg %p306
        %p462 = pneg %p303
        %p463 = pneg %p327
        %p464 = pneg %p324
        %p465 = pneg %p353
        %p466 = pneg %p350
        %s467 = sand.u32 %s340, 1
        %s468 = scalar_lea.sflag [#allocation4], %s467
        %s469 = sand.u32 %s340, 1
        %s470 = smul.addr %s469, 8
        %s471 = scalar_lea.vmem [#allocation3], %s470
        %p472 = scmp.lt.s32.totalorder %s28, 1
        %s473 = scalar_select %p472, %s28, 1
        %s474 = smul.addr %s473, 8
        %s475 = scalar_lea.vmem %s0, %s474
        %p476 = scmp.lt.s32.totalorder %s28, 1
        %s477 = scalar_select %p476, %s28, 1
        %s478 = smul.addr %s477, 8
        %s479 = scalar_lea.vmem %s1, %s478
        %v480 = vld [vmem:[%s475] sm:$0xff]
        %v481 = vld [vmem:[%s479] sm:$0x3f]
        %vm482 = vcmask 261120
        %v483 = vsel %vm482, %v480, 0.0
        %484 = vadd.xlane.f32.xlu0 %v483
        %v485 = vpop.xlane.xlu0 %484
        %v486 = vrcp.pop 32.0
        %v487 = vmul.f32 32.0, %v486
        %v488 = vsub.f32 1.0, %v487
        %v489 = vmul.f32 %v486, %v488
        %v490 = vadd.f32 %v486, %v489
        %vm491 = vweird.f32 %v486
        %v492 = vsel %vm491, %v486, %v490
        %v493 = vmul.f32 %v485, %v492
        %v494 = vsub.f32 %v480, %v493
        %v495 = vmul.f32 %v494, %v494
        %v496 = vsel %vm482, %v495, 0.0
        %497 = vadd.xlane.f32.xlu0 %v496
        %v498 = vpop.xlane.xlu0 %497
        %v499 = vmul.f32 %v498, %v492
        %v500 = vadd.f32 %v499, 1e-05
        %v501 = vrsqrt.pop %v500
        %v502 = vmul.f32 %v501, %v500
        %v503 = vmul.f32 %v502, %v501
        %v504 = vmul.f32 0.5, %v503
        %v505 = vsub.f32 1.5, %v504
        %v506 = vmul.f32 %v501, %v505
        %vm507 = vweird.f32 %v500
        %vm508 = vweird.f32 %v501
        %vm509 = vmor %vm507, %vm508
        %v510 = vsel %vm509, %v501, %v506
        %v511 = vmul.f32 %v494, %v510
        %v512 = vld [vmem:[%s2] sm:$0x1]
        %v514 = vperm.slane %v512, 0
        %v516 = vmul.f32 %v511, %v514
        %v517 = vld [vmem:[%s3] sm:$0x1]
        %v519 = vperm.slane %v517, 0
        %v521 = vadd.f32 %v516, %v519
        %v522 = vadd.f32 %v481, 1.0
        %v523 = vperm.slane %v522, 0
        %v524 = vmul.f32 %v521, %v523
        %v525 = vperm.slane %v481, 1
        %v526 = vadd.f32 %v524, %v525
        %v527 = vld [vmem:[%s6] sm:$0xff]
        %v528 = vld [vmem:[%s6 + $0x8] sm:$0xff]
        %v529 = vld [vmem:[%s6 + $0x10] sm:$0xff]
        %v530 = vld [vmem:[%s6 + $0x18] sm:$0xff]
        %v531 = vld [vmem:[%s6 + $0x20] sm:$0xff]
        %v532 = vld [vmem:[%s6 + $0x28] sm:$0xff]
        %v533 = vld [vmem:[%s6 + $0x30] sm:$0xff]
        %v534 = vld [vmem:[%s6 + $0x38] sm:$0xff]
        %v535 = vld [vmem:[%s7] sm:$0x3]
        %v537 = vperm.slane %v535, 0
        %v538 = vperm.slane %v535, 1
        %v542 = vsel %vm482, %v526, 0
        %544 = vmatpush.msra.mxu0 0.0
        %545 = vmatpush.msra.mxu0 0.0
        %546 = vmatpush.msra.mxu0 0.0
        %547 = vmatpush.msra.mxu0 0.0
        %548 = vmatpush.msra.mxu0 0.0
        %549 = vmatpush.msra.mxu0 0.0
        %550 = vmatpush.msra.mxu0 0.0
        %551 = vmatpush.msra.mxu0 0.0
        %552 = vmatpush.msra.mxu0 0.0
        %553 = vmatpush.msra.mxu0 0.0
        %554 = vmatpush.msra.mxu0 0.0
        %555 = vmatpush.msra.mxu0 0.0
        %556 = vmatpush.msra.mxu0 %v533
        %557 = vmatpush.msra.mxu0 %v531
        %558 = vmatpush.msra.mxu0 %v529
        %559 = vmatpush.msra.mxu0 %v527
        %560 = vmatmul.f32.gmra.mxu0 %v542
        %v561 = vpop.f32.mrf.mxu0
        %v562 = vadd.f32 %v537, %v561
        %563 = vdwg.mxu0
        %564 = vmatpush.msra.mxu0 0.0
        %565 = vmatpush.msra.mxu0 0.0
        %566 = vmatpush.msra.mxu0 0.0
        %567 = vmatpush.msra.mxu0 0.0
        %568 = vmatpush.msra.mxu0 0.0
        %569 = vmatpush.msra.mxu0 0.0
        %570 = vmatpush.msra.mxu0 0.0
        %571 = vmatpush.msra.mxu0 0.0
        %572 = vmatpush.msra.mxu0 0.0
        %573 = vmatpush.msra.mxu0 0.0
        %574 = vmatpush.msra.mxu0 0.0
        %575 = vmatpush.msra.mxu0 0.0
        %576 = vmatpush.msra.mxu0 %v534
        %577 = vmatpush.msra.mxu0 %v532
        %578 = vmatpush.msra.mxu0 %v530
        %579 = vmatpush.msra.mxu0 %v528
        %580 = vmatmul.f32.gmra.mxu0 %v542
        %v581 = vpop.f32.mrf.mxu0
        %v582 = vadd.f32 %v538, %v581
        %583 = vdwg.mxu0
        %v584 = vmul.f32 %v562, 0.35355338
        %586 = vrot.lane.b32.xlu0 %v562, 64
        %v587 = vpop.permute.xlu0 %586
        %v589 = vsel %vm482, %v584, 0
        %v591 = vsel %vm482, %v587, 0
        %593 = vmatpush.xpose.msra.mxu0 0.0
        %594 = vmatpush.xpose.msra.mxu0 0.0
        %595 = vmatpush.xpose.msra.mxu0 0.0
        %596 = vmatpush.xpose.msra.mxu0 0.0
        %597 = vmatpush.xpose.msra.mxu0 0.0
        %598 = vmatpush.xpose.msra.mxu0 0.0
        %599 = vmatpush.xpose.msra.mxu0 0.0
        %600 = vmatpush.xpose.msra.mxu0 0.0
        %601 = vmatpush.xpose.msra.mxu0 0.0
        %602 = vmatpush.xpose.msra.mxu0 0.0
        %603 = vmatpush.xpose.msra.mxu0 0.0
        %604 = vmatpush.xpose.msra.mxu0 0.0
        %605 = vmatpush.xpose.msra.mxu0 0.0
        %606 = vmatpush.xpose.msra.mxu0 0.0
        %607 = vmatpush.xpose.msra.mxu0 0.0
        %608 = vmatpush.xpose.msra.mxu0 %v591
        %609 = vmatmul.f32.gmra.mxu0 %v589
        %v610 = vpop.f32.mrf.mxu0
        %v611 = vadd.f32 0.0, %v610
        %612 = vdwg.mxu0
        %vm613 = vcmask 64512
        %v614 = vsel %vm613, %v611, -inf
        %615 = vmax.xlane.f32.xlu0 %v614
        %v616 = vpop.xlane.xlu0 %615
        %v617 = vsub.f32 %v611, %v616
        %v618 = vmul.f32 %v617, 1.442695
        %v619 = vpow.pop %v618
        %v620 = vsel %vm613, %v619, 0.0
        %621 = vadd.xlane.f32.xlu0 %v620
        %v622 = vpop.xlane.xlu0 %621
        %v623 = vrcp.pop %v622
        %v624 = vmul.f32 %v619, %v623
        %v626 = vsel %vm613, %v624, 0
        %628 = vmatpush.msra.mxu0 0.0
        %629 = vmatpush.msra.mxu0 0.0
        %630 = vmatpush.msra.mxu0 0.0
        %631 = vmatpush.msra.mxu0 0.0
        %632 = vmatpush.msra.mxu0 0.0
        %633 = vmatpush.msra.mxu0 0.0
        %634 = vmatpush.msra.mxu0 0.0
        %635 = vmatpush.msra.mxu0 0.0
        %636 = vmatpush.msra.mxu0 0.0
        %637 = vmatpush.msra.mxu0 0.0
        %638 = vmatpush.msra.mxu0 0.0
        %639 = vmatpush.msra.mxu0 0.0
        %640 = vmatpush.msra.mxu0 0.0
        %641 = vmatpush.msra.mxu0 0.0
        %642 = vmatpush.msra.mxu0 0.0
        %643 = vmatpush.msra.mxu0 %v582
        %644 = vmatmul.f32.gmra.mxu0 %v626
        %v645 = vpop.f32.mrf.mxu0
        %v646 = vadd.f32 0.0, %v645
        %647 = vdwg.mxu0
        %648 = vst.msk [vmem:[#allocation2] sm:$0xff] %vm482, %v646
        %649 = vrot.lane.b32.xlu0 %v584, 96
        %v650 = vpop.permute.xlu0 %649
        %651 = vrot.lane.b32.xlu0 %v562, 32
        %v652 = vpop.permute.xlu0 %651
        %v653 = vsel %vm482, %v650, 0
        %v655 = vsel %vm482, %v652, 0
        %657 = vmatpush.xpose.msra.mxu0 0.0
        %658 = vmatpush.xpose.msra.mxu0 0.0
        %659 = vmatpush.xpose.msra.mxu0 0.0
        %660 = vmatpush.xpose.msra.mxu0 0.0
        %661 = vmatpush.xpose.msra.mxu0 0.0
        %662 = vmatpush.xpose.msra.mxu0 0.0
        %663 = vmatpush.xpose.msra.mxu0 0.0
        %664 = vmatpush.xpose.msra.mxu0 0.0
        %665 = vmatpush.xpose.msra.mxu0 0.0
        %666 = vmatpush.xpose.msra.mxu0 0.0
        %667 = vmatpush.xpose.msra.mxu0 0.0
        %668 = vmatpush.xpose.msra.mxu0 0.0
        %669 = vmatpush.xpose.msra.mxu0 0.0
        %670 = vmatpush.xpose.msra.mxu0 0.0
        %671 = vmatpush.xpose.msra.mxu0 0.0
        %672 = vmatpush.xpose.msra.mxu0 %v655
        %673 = vmatmul.f32.gmra.mxu0 %v653
        %v674 = vpop.f32.mrf.mxu0
        %v675 = vadd.f32 0.0, %v674
        %676 = vdwg.mxu0
        %v677 = vsel %vm613, %v675, -inf
        %678 = vmax.xlane.f32.xlu0 %v677
        %v679 = vpop.xlane.xlu0 %678
        %v680 = vsub.f32 %v675, %v679
        %v681 = vmul.f32 %v680, 1.442695
        %v682 = vpow.pop %v681
        %v683 = vsel %vm613, %v682, 0.0
        %684 = vadd.xlane.f32.xlu0 %v683
        %v685 = vpop.xlane.xlu0 %684
        %v686 = vrcp.pop %v685
        %v687 = vmul.f32 %v682, %v686
        %689 = vrot.lane.b32.xlu0 %v582, 96
        %v690 = vpop.permute.xlu0 %689
        %v693 = vsel %vm613, %v687, 0
        %695 = vmatpush.msra.mxu0 0.0
        %696 = vmatpush.msra.mxu0 0.0
        %697 = vmatpush.msra.mxu0 0.0
        %698 = vmatpush.msra.mxu0 0.0
        %699 = vmatpush.msra.mxu0 0.0
        %700 = vmatpush.msra.mxu0 0.0
        %701 = vmatpush.msra.mxu0 0.0
        %702 = vmatpush.msra.mxu0 0.0
        %703 = vmatpush.msra.mxu0 0.0
        %704 = vmatpush.msra.mxu0 0.0
        %705 = vmatpush.msra.mxu0 0.0
        %706 = vmatpush.msra.mxu0 0.0
        %707 = vmatpush.msra.mxu0 0.0
        %708 = vmatpush.msra.mxu0 0.0
        %709 = vmatpush.msra.mxu0 0.0
        %710 = vmatpush.msra.mxu0 %v690
        %711 = vmatmul.f32.gmra.mxu0 %v693
        %v712 = vpop.f32.mrf.mxu0
        %v713 = vadd.f32 0.0, %v712
        %714 = vdwg.mxu0
        %716 = vrot.lane.b32.xlu0 %v713, 32
        %v717 = vpop.permute.xlu0 %716
        %vm719 = vcmask 523520
        %720 = vst.msk [vmem:[#allocation2] sm:$0xff] %vm719, %v717
        %v721 = vld [vmem:[#allocation2] sm:$0xff]
        %v722 = vld [vmem:[%s8] sm:$0xff]
        %v723 = vld [vmem:[%s8 + $0x8] sm:$0xff]
        %v724 = vld [vmem:[%s8 + $0x10] sm:$0xff]
        %v725 = vld [vmem:[%s8 + $0x18] sm:$0xff]
        %v726 = vld [vmem:[%s8 + $0x20] sm:$0xff]
        %v727 = vld [vmem:[%s8 + $0x28] sm:$0xff]
        %v728 = vld [vmem:[%s8 + $0x30] sm:$0xff]
        %v729 = vld [vmem:[%s8 + $0x38] sm:$0xff]
        %v730 = vld [vmem:[%s9] sm:$0x1]
        %v732 = vperm.slane %v730, 0
        %vm734 = vcmask 523264
        %v736 = vsel %vm734, %v721, 0
        %738 = vmatpush.msra.mxu0 0.0
        %739 = vmatpush.msra.mxu0 0.0
        %740 = vmatpush.msra.mxu0 0.0
        %741 = vmatpush.msra.mxu0 0.0
        %742 = vmatpush.msra.mxu0 0.0
        %743 = vmatpush.msra.mxu0 0.0
        %744 = vmatpush.msra.mxu0 0.0
        %745 = vmatpush.msra.mxu0 0.0
        %746 = vmatpush.msra.mxu0 %v729
        %747 = vmatpush.msra.mxu0 %v728
        %748 = vmatpush.msra.mxu0 %v727
        %749 = vmatpush.msra.mxu0 %v726
        %750 = vmatpush.msra.mxu0 %v725
        %751 = vmatpush.msra.mxu0 %v724
        %752 = vmatpush.msra.mxu0 %v723
        %753 = vmatpush.msra.mxu0 %v722
        %754 = vmatmul.f32.gmra.mxu0 %v736
        %v755 = vpop.f32.mrf.mxu0
        %v756 = vadd.f32 %v732, %v755
        %757 = vdwg.mxu0
        %v758 = vperm.slane %v481, 2
        %v759 = vmul.f32 %v756, %v758
        %v760 = vadd.f32 %v480, %v759
        %v761 = vsel %vm482, %v760, 0.0
        %762 = vadd.xlane.f32.xlu0 %v761
        %v763 = vpop.xlane.xlu0 %762
        %v764 = vmul.f32 %v763, %v492
        %v765 = vsub.f32 %v760, %v764
        %v766 = vmul.f32 %v765, %v765
        %v767 = vsel %vm482, %v766, 0.0
        %768 = vadd.xlane.f32.xlu0 %v767
        %v769 = vpop.xlane.xlu0 %768
        %v770 = vmul.f32 %v769, %v492
        %v771 = vadd.f32 %v770, 1e-05
        %v772 = vrsqrt.pop %v771
        %v773 = vmul.f32 %v772, %v771
        %v774 = vmul.f32 %v773, %v772
        %v775 = vmul.f32 0.5, %v774
        %v776 = vsub.f32 1.5, %v775
        %v777 = vmul.f32 %v772, %v776
        %vm778 = vweird.f32 %v771
        %vm779 = vweird.f32 %v772
        %vm780 = vmor %vm778, %vm779
        %v781 = vsel %vm780, %v772, %v777
        %v782 = vmul.f32 %v765, %v781
        %v783 = vld [vmem:[%s4] sm:$0x1]
        %v785 = vperm.slane %v783, 0
        %v787 = vmul.f32 %v782, %v785
        %v788 = vld [vmem:[%s5] sm:$0x1]
        %v790 = vperm.slane %v788, 0
        %v792 = vadd.f32 %v787, %v790
        %v793 = vperm.slane %v522, 3
        %v794 = vmul.f32 %v792, %v793
        %v795 = vperm.slane %v481, 4
        %v796 = vadd.f32 %v794, %v795
        %v797 = vld [vmem:[%s10] sm:$0xff]
        %v798 = vld [vmem:[%s10 + $0x8] sm:$0xff]
        %v799 = vld [vmem:[%s10 + $0x10] sm:$0xff]
        %v800 = vld [vmem:[%s10 + $0x18] sm:$0xff]
        %v801 = vld [vmem:[%s11] sm:$0x1]
        %v803 = vperm.slane %v801, 0
        %v806 = vsel %vm482, %v796, 0
        %808 = vmatpush.msra.mxu0 0.0
        %809 = vmatpush.msra.mxu0 0.0
        %810 = vmatpush.msra.mxu0 0.0
        %811 = vmatpush.msra.mxu0 0.0
        %812 = vmatpush.msra.mxu0 0.0
        %813 = vmatpush.msra.mxu0 0.0
        %814 = vmatpush.msra.mxu0 0.0
        %815 = vmatpush.msra.mxu0 0.0
        %816 = vmatpush.msra.mxu0 0.0
        %817 = vmatpush.msra.mxu0 0.0
        %818 = vmatpush.msra.mxu0 0.0
        %819 = vmatpush.msra.mxu0 0.0
        %820 = vmatpush.msra.mxu0 %v800
        %821 = vmatpush.msra.mxu0 %v799
        %822 = vmatpush.msra.mxu0 %v798
        %823 = vmatpush.msra.mxu0 %v797
        %824 = vmatmul.f32.gmra.mxu0 %v806
        %v825 = vpop.f32.mrf.mxu0
        %v826 = vadd.f32 %v803, %v825
        %827 = vdwg.mxu0
        %v828 = vmax.f32 %v826, 0.0
        %v829 = vld [vmem:[%s12] sm:$0xff]
        %v830 = vld [vmem:[%s12 + $0x8] sm:$0xff]
        %v831 = vld [vmem:[%s12 + $0x10] sm:$0xff]
        %v832 = vld [vmem:[%s12 + $0x18] sm:$0xff]
        %v833 = vld [vmem:[%s12 + $0x20] sm:$0xff]
        %v834 = vld [vmem:[%s12 + $0x28] sm:$0xff]
        %v835 = vld [vmem:[%s12 + $0x30] sm:$0xff]
        %v836 = vld [vmem:[%s12 + $0x38] sm:$0xff]
        %v837 = vld [vmem:[%s12 + $0x40] sm:$0xff]
        %v838 = vld [vmem:[%s12 + $0x48] sm:$0xff]
        %v839 = vld [vmem:[%s12 + $0x50] sm:$0xff]
        %v840 = vld [vmem:[%s12 + $0x58] sm:$0xff]
        %v841 = vld [vmem:[%s12 + $0x60] sm:$0xff]
        %v842 = vld [vmem:[%s12 + $0x68] sm:$0xff]
        %v843 = vld [vmem:[%s12 + $0x70] sm:$0xff]
        %v844 = vld [vmem:[%s12 + $0x78] sm:$0xff]
        %v845 = vld [vmem:[%s13] sm:$0x1]
        %v847 = vperm.slane %v845, 0
        %849 = vmatpush.msra.mxu0 %v844
        %850 = vmatpush.msra.mxu0 %v843
        %851 = vmatpush.msra.mxu0 %v842
        %852 = vmatpush.msra.mxu0 %v841
        %853 = vmatpush.msra.mxu0 %v840
        %854 = vmatpush.msra.mxu0 %v839
        %855 = vmatpush.msra.mxu0 %v838
        %856 = vmatpush.msra.mxu0 %v837
        %857 = vmatpush.msra.mxu0 %v836
        %858 = vmatpush.msra.mxu0 %v835
        %859 = vmatpush.msra.mxu0 %v834
        %860 = vmatpush.msra.mxu0 %v833
        %861 = vmatpush.msra.mxu0 %v832
        %862 = vmatpush.msra.mxu0 %v831
        %863 = vmatpush.msra.mxu0 %v830
        %864 = vmatpush.msra.mxu0 %v829
        %865 = vmatmul.f32.gmra.mxu0 %v828
        %v866 = vpop.f32.mrf.mxu0
        %v867 = vadd.f32 %v847, %v866
        %868 = vdwg.mxu0
        %v869 = vperm.slane %v481, 5
        %v870 = vmul.f32 %v867, %v869
        %v871 = vadd.f32 %v760, %v870
        %872 = vst.msk [vmem:[%s471] sm:$0xff] %vm482, %v871
        %s873 = sand.u32 %s340, 1
        %s874 = scalar_lea.sflag [#allocation4], %s873
        %s875 = sand.u32 %s340, 1
        %s876 = smul.addr %s875, 8
        %s877 = scalar_lea.vmem [#allocation3], %s876
        // Predicated region
        $region77: #{tpu_custom_call.1} parent=75 // pred_check
          %p878 = pneg %p350
        $region78: #{tpu_custom_call.1} parent=75 // pred_check_branch
          %880 = sbr.rel (%p878) target = $region80
        $region79: #{tpu_custom_call.1} parent=75 // pred_region
          %882 = vsyncadd %s874, 0
          %s883 = smul.addr %s28, 8
          %s884 = scalar_lea.hbm %s14, %s883
          %s886 = sshll.u32 %s877, 4
          %s887 = int_to_ptr.vmem [resolvable:$true] %s886
          %s888 = sshll.u32 %s884, 4
          %s889 = int_to_ptr.hbm [resolvable:$true] %s888
          %891 = dma.vmem_to_hbm [thread:$0]  %s887, 128, %s889, %s874
        $region80: #{tpu_custom_call.1} parent=75 // pred_fallthru
          _
      $region76: #{tpu_custom_call.1} parent=5 // pred_fallthru
        _
      %p892 = scmp.le.s32.totalorder 2, %s23
      // Predicated region
      $region81: #{tpu_custom_call.1} parent=5 // pred_check
        %p893 = pneg %p892
      $region82: #{tpu_custom_call.1} parent=5 // pred_check_branch
        %895 = sbr.rel (%p893) target = $region84
      $region83: #{tpu_custom_call.1} parent=5 // pred_region
        %s896 = ssub.s32 %s23, 2
        // Predicated region
        $region85: #{tpu_custom_call.1} parent=83 // pred_check
          %p897 = pneg %p356
        $region86: #{tpu_custom_call.1} parent=83 // pred_check_branch
          %899 = sbr.rel (%p897) target = $region88
        $region87: #{tpu_custom_call.1} parent=83 // pred_region
          %s900 = sand.u32 %s341, 1
          %s901 = scalar_lea.sflag [#allocation4], %s900
          %s902 = sand.u32 %s341, 1
          %s903 = smul.addr %s902, 8
          %s904 = scalar_lea.vmem [#allocation3], %s903
          %906 = dma.done %s901, 128
        $region88: #{tpu_custom_call.1} parent=83 // pred_fallthru
          _
      $region84: #{tpu_custom_call.1} parent=5 // pred_fallthru
        _
    $region6: #{tpu_custom_call.1} parent=1 // loop_footer
      %s27 = sadd.s32 1, %s23
    $region7: #{tpu_custom_call.1} parent=1 // loop_footer_branch
      %22 = sbr.rel target = $region3
    $region8: #{tpu_custom_call.1} parent=1 // loop_exit
      _
    %907 = vsyncpa [#allocation4], 1
    %s908 = scalar_lea.sflag [#allocation4], 1
    %909 = vsyncpa %s908, 1

</llo_original>
